<compile_context>
chip_gen: v7x
topology: tpu7x:2x2x1
jax: 0.10.0
libtpu: 0.0.40
codegen_flags: <defaults>
</compile_context>

<pallas_src>
import jax
import jax.numpy as jnp
from jax.experimental import pallas as pl
from jax.experimental.pallas import tpu as pltpu


def _round_up(n, m):
    return ((n + m - 1) // m) * m


def _cdiv(a, b):
    return (a + b - 1) // b


def mlp_kernel(x_ref, w1_ref, b1_ref, w2_ref, b2_ref, w3_ref, b3_ref, o_ref):
    # Layer 1: (TB, Din) @ (Din, 64) -> +bias -> ReLU   (f32 MXU, f32 accumulate)
    h1 = jnp.dot(x_ref[...], w1_ref[...], preferred_element_type=jnp.float32)
    h1 = jnp.maximum(h1 + b1_ref[...], 0.0)

    # Layer 2: (TB, 64) @ (64, 16) -> Dropout(identity, eval) -> ReLU
    h2 = jnp.dot(h1, w2_ref[...], preferred_element_type=jnp.float32)
    h2 = jnp.maximum(h2 + b2_ref[...], 0.0)

    # Layer 3: (TB, 16) @ (16, Dout) -> +bias -> store real-width block
    h3 = jnp.dot(h2, w3_ref[...], preferred_element_type=jnp.float32)
    o_ref[...] = (h3 + b3_ref[...]).astype(o_ref.dtype)


def mlp_forward(x, params, *, block_rows=8192):
    """x: (B, input_dim) float32. params: f32 (w1,b1,w2,b2,w3,b3), w as (in, out), b as (1, out)."""
    w1, b1, w2, b2, w3, b3 = params
    B, din = x.shape
    d_h1 = w1.shape[1]           # 64
    d_h2 = w2.shape[1]           # 16
    dout = w3.shape[1]           # output_dim

    x = x.astype(jnp.float32)

    # --- batch tiling: multiple of 16 rows, no wrapper-side padding (Pallas masks the
    #     partial tail block); prefer a >=2-step grid so both TCs get work on v7x. ---
    tb = min(block_rows, _round_up(B, 16))
    tb = max(16, _round_up(tb, 16))
    if _cdiv(B, tb) < 2 and B > 16:
        tb = max(16, _round_up(_cdiv(B, 2), 16))
    grid = (_cdiv(B, tb),)

    def resident(arr):
        # Weight/bias block == full array; constant index_map -> stays VMEM-resident.
        return pl.BlockSpec(arr.shape, lambda i: (0, 0))

    # --- scheduler hints: real (unpadded) bytes, f32 everywhere ---
    flops = 2 * B * (din * d_h1 + d_h1 * d_h2 + d_h2 * dout)
    weight_bytes = 4 * (w1.size + b1.size + w2.size + b2.size + w3.size + b3.size)
    bytes_accessed = 4 * (B * din + B * dout) + weight_bytes

    # --- VMEM budget from the actual double-buffered footprint (+ headroom) ---
    tile_bytes = 2 * (tb * din * 4 + tb * dout * 4)        # double-buffered activations
    tile_bytes += 2 * weight_bytes                          # resident weights (+buffering slack)
    vmem_limit = min(48 * 1024 * 1024, max(4 * 1024 * 1024, 2 * tile_bytes))

    out = pl.pallas_call(
        mlp_kernel,
        out_shape=jax.ShapeDtypeStruct((B, dout), jnp.float32),
        grid_spec=pltpu.PrefetchScalarGridSpec(
            num_scalar_prefetch=0,
            grid=grid,
            in_specs=[
                pl.BlockSpec((tb, din), lambda i: (i, 0)),
                resident(w1), resident(b1),
                resident(w2), resident(b2),
                resident(w3), resident(b3),
            ],
            out_specs=pl.BlockSpec((tb, dout), lambda i: (i, 0)),
        ),
        compiler_params=pltpu.CompilerParams(
            dimension_semantics=("parallel",),   # shards batch tiles across TCs on v7x
            vmem_limit_bytes=int(vmem_limit),
        ),
        cost_estimate=pl.CostEstimate(
            flops=flops, transcendentals=0, bytes_accessed=bytes_accessed),
    )(x, w1, b1, w2, b2, w3, b3)

    return out


def init_params(key, input_dim, output_dim):
    """Deterministic init mimicking PyTorch nn.Linear default (uniform +/- 1/sqrt(fan_in))."""
    def linear(key, fan_in, fan_out):
        kw, kb = jax.random.split(key)
        bound = 1.0 / jnp.sqrt(fan_in)
        w = jax.random.uniform(kw, (fan_in, fan_out), jnp.float32, -bound, bound)
        b = jax.random.uniform(kb, (1, fan_out), jnp.float32, -bound, bound)
        return w, b

    k1, k2, k3 = jax.random.split(key, 3)
    w1, b1 = linear(k1, input_dim, 64)
    w2, b2 = linear(k2, 64, 16)
    w3, b3 = linear(k3, 16, output_dim)
    return (w1, b1, w2, b2, w3, b3)


def reference_forward(x, params):
    """Pure-JAX f32 reference matching the PyTorch forward (Dropout in eval mode)."""
    w1, b1, w2, b2, w3, b3 = params
    h1 = jnp.maximum(jnp.dot(x, w1) + b1, 0.0)
    h2 = jnp.maximum(jnp.dot(h1, w2) + b2, 0.0)   # dropout == identity (eval)
    return jnp.dot(h2, w3) + b3


if __name__ == "__main__":
    input_dim = 32
    output_dim = 8
    batch = 20  # not a multiple of the tile size -> exercises the masked tail block

    key = jax.random.PRNGKey(0)
    kx, kp = jax.random.split(key)

    x = jax.random.normal(kx, (batch, input_dim), dtype=jnp.float32)
    params = init_params(kp, input_dim, output_dim)

    out = mlp_forward(x, params)
    jax.block_until_ready(out)

    ref = reference_forward(x, params)
    assert out.shape == (batch, output_dim), out.shape
    assert jnp.allclose(out, ref, atol=1e-2, rtol=1e-2), (
        f"max abs err {jnp.max(jnp.abs(out - ref))}")

    print("KERNEL_OK")
</pallas_src>

<mosaic_0001>
module attributes {stable_mosaic.version = 11 : i64} {
  func.func @mlp_kernel(%arg0: i32, %arg1: memref<16x32xf32, #tpu.memory_space<vmem>>, %arg2: memref<32x64xf32, #tpu.memory_space<vmem>>, %arg3: memref<1x64xf32, #tpu.memory_space<vmem>>, %arg4: memref<64x16xf32, #tpu.memory_space<vmem>>, %arg5: memref<1x16xf32, #tpu.memory_space<vmem>>, %arg6: memref<16x8xf32, #tpu.memory_space<vmem>>, %arg7: memref<1x8xf32, #tpu.memory_space<vmem>>, %arg8: memref<16x8xf32, #tpu.memory_space<vmem>>) attributes {dimension_semantics = [#tpu.dimension_semantics<parallel>], iteration_bounds = array<i64: 2>, scalar_prefetch = 0 : i64, scratch_operands = 0 : i64, tpu.core_type = #tpu.core_type<tc>, window_params = [{transform_indices = @transform_0, window_bounds = array<i64: 16, 32>}, {pipeline_mode = #tpu.pipeline_mode<synchronous>, transform_indices = @transform_1, window_bounds = array<i64: 32, 64>}, {pipeline_mode = #tpu.pipeline_mode<synchronous>, transform_indices = @transform_2, window_bounds = array<i64: 1, 64>}, {pipeline_mode = #tpu.pipeline_mode<synchronous>, transform_indices = @transform_3, window_bounds = array<i64: 64, 16>}, {pipeline_mode = #tpu.pipeline_mode<synchronous>, transform_indices = @transform_4, window_bounds = array<i64: 1, 16>}, {pipeline_mode = #tpu.pipeline_mode<synchronous>, transform_indices = @transform_5, window_bounds = array<i64: 16, 8>}, {pipeline_mode = #tpu.pipeline_mode<synchronous>, transform_indices = @transform_6, window_bounds = array<i64: 1, 8>}, {transform_indices = @transform_7, window_bounds = array<i64: 16, 8>}]} {
    %c0 = arith.constant 0 : index
    %c0_0 = arith.constant 0 : index
    %0 = vector.load %arg1[%c0, %c0_0] : memref<16x32xf32, #tpu.memory_space<vmem>>, vector<16x32xf32>
    %c0_1 = arith.constant 0 : index
    %c0_2 = arith.constant 0 : index
    %1 = vector.load %arg2[%c0_1, %c0_2] : memref<32x64xf32, #tpu.memory_space<vmem>>, vector<32x64xf32>
    %cst = arith.constant dense<0.000000e+00> : vector<16x64xf32>
    %2 = tpu.matmul %0, %1, %cst {dimension_numbers = #tpu.dot_dimension_numbers<[1], [0], [0], [1], [0, 0, 1, 1], [], []>} : vector<16x32xf32>, vector<32x64xf32>, vector<16x64xf32> -> vector<16x64xf32>
    %c0_3 = arith.constant 0 : index
    %c0_4 = arith.constant 0 : index
    %3 = vector.load %arg3[%c0_3, %c0_4] : memref<1x64xf32, #tpu.memory_space<vmem>>, vector<1x64xf32>
    %4 = vector.broadcast %3 : vector<1x64xf32> to vector<16x64xf32>
    %5 = arith.addf %2, %4 : vector<16x64xf32>
    %cst_5 = arith.constant 0.000000e+00 : f32
    %6 = vector.broadcast %cst_5 : f32 to vector<16x64xf32>
    %7 = arith.maximumf %5, %6 : vector<16x64xf32>
    %c0_6 = arith.constant 0 : index
    %c0_7 = arith.constant 0 : index
    %8 = vector.load %arg4[%c0_6, %c0_7] : memref<64x16xf32, #tpu.memory_space<vmem>>, vector<64x16xf32>
    %cst_8 = arith.constant dense<0.000000e+00> : vector<16x16xf32>
    %9 = tpu.matmul %7, %8, %cst_8 {dimension_numbers = #tpu.dot_dimension_numbers<[1], [0], [0], [1], [0, 0, 1, 1], [], []>} : vector<16x64xf32>, vector<64x16xf32>, vector<16x16xf32> -> vector<16x16xf32>
    %c0_9 = arith.constant 0 : index
    %c0_10 = arith.constant 0 : index
    %10 = vector.load %arg5[%c0_9, %c0_10] : memref<1x16xf32, #tpu.memory_space<vmem>>, vector<1x16xf32>
    %11 = vector.broadcast %10 : vector<1x16xf32> to vector<16x16xf32>
    %12 = arith.addf %9, %11 : vector<16x16xf32>
    %cst_11 = arith.constant 0.000000e+00 : f32
    %13 = vector.broadcast %cst_11 : f32 to vector<16x16xf32>
    %14 = arith.maximumf %12, %13 : vector<16x16xf32>
    %c0_12 = arith.constant 0 : index
    %c0_13 = arith.constant 0 : index
    %15 = vector.load %arg6[%c0_12, %c0_13] : memref<16x8xf32, #tpu.memory_space<vmem>>, vector<16x8xf32>
    %cst_14 = arith.constant dense<0.000000e+00> : vector<16x8xf32>
    %16 = tpu.matmul %14, %15, %cst_14 {dimension_numbers = #tpu.dot_dimension_numbers<[1], [0], [0], [1], [0, 0, 1, 1], [], []>} : vector<16x16xf32>, vector<16x8xf32>, vector<16x8xf32> -> vector<16x8xf32>
    %c0_15 = arith.constant 0 : index
    %c0_16 = arith.constant 0 : index
    %17 = vector.load %arg7[%c0_15, %c0_16] : memref<1x8xf32, #tpu.memory_space<vmem>>, vector<1x8xf32>
    %18 = vector.broadcast %17 : vector<1x8xf32> to vector<16x8xf32>
    %19 = arith.addf %16, %18 : vector<16x8xf32>
    %c0_17 = arith.constant 0 : index
    %c0_18 = arith.constant 0 : index
    %20 = vector.load %arg8[%c0_17, %c0_18] : memref<16x8xf32, #tpu.memory_space<vmem>>, vector<16x8xf32>
    tpu.vector_store %arg8[%c0_17, %c0_18], %19 {strides = array<i32>} : memref<16x8xf32, #tpu.memory_space<vmem>>, vector<16x8xf32>,
    return
  }
  func.func @transform_0(%arg0: i32) -> (i32, i32) {
    %c0_i32 = arith.constant 0 : i32
    %c0_i32_0 = arith.constant 0 : i32
    return %arg0, %c0_i32 : i32, i32
  }
  func.func @transform_1(%arg0: i32) -> (i32, i32) {
    %c0_i32 = arith.constant 0 : i32
    %c0_i32_0 = arith.constant 0 : i32
    %c0_i32_1 = arith.constant 0 : i32
    return %c0_i32, %c0_i32_0 : i32, i32
  }
  func.func @transform_2(%arg0: i32) -> (i32, i32) {
    %c0_i32 = arith.constant 0 : i32
    %c0_i32_0 = arith.constant 0 : i32
    %c0_i32_1 = arith.constant 0 : i32
    return %c0_i32, %c0_i32_0 : i32, i32
  }
  func.func @transform_3(%arg0: i32) -> (i32, i32) {
    %c0_i32 = arith.constant 0 : i32
    %c0_i32_0 = arith.constant 0 : i32
    %c0_i32_1 = arith.constant 0 : i32
    return %c0_i32, %c0_i32_0 : i32, i32
  }
  func.func @transform_4(%arg0: i32) -> (i32, i32) {
    %c0_i32 = arith.constant 0 : i32
    %c0_i32_0 = arith.constant 0 : i32
    %c0_i32_1 = arith.constant 0 : i32
    return %c0_i32, %c0_i32_0 : i32, i32
  }
  func.func @transform_5(%arg0: i32) -> (i32, i32) {
    %c0_i32 = arith.constant 0 : i32
    %c0_i32_0 = arith.constant 0 : i32
    %c0_i32_1 = arith.constant 0 : i32
    return %c0_i32, %c0_i32_0 : i32, i32
  }
  func.func @transform_6(%arg0: i32) -> (i32, i32) {
    %c0_i32 = arith.constant 0 : i32
    %c0_i32_0 = arith.constant 0 : i32
    %c0_i32_1 = arith.constant 0 : i32
    return %c0_i32, %c0_i32_0 : i32, i32
  }
  func.func @transform_7(%arg0: i32) -> (i32, i32) {
    %c0_i32 = arith.constant 0 : i32
    %c0_i32_0 = arith.constant 0 : i32
    return %arg0, %c0_i32 : i32, i32
  }
}

</mosaic_0001>

<llo_original>
// kernel: tpu_custom_call.1
$region0: #{tpu_custom_call.1}
  #allocation0 [shape = 'u32[]', space=smem, size = 0x4, offset = 0x4, fixed_abs, tag = 'smem constant byte address 0x4 - core index']
  #allocation1 [shape = 'u32[144,128]{1,0:T(1,128)}', space=vmem, size = 0x12000, scoped, tag = 'internal scratch']
  %s0 = inlined_call_operand.vmem [shape: f32[20,32], index: 0, kind: input, shape index: {}]
  %s1 = inlined_call_operand.vmem [shape: f32[32,64], index: 1, kind: input, shape index: {}]
  %s2 = inlined_call_operand.vmem [shape: f32[1,64], index: 2, kind: input, shape index: {}]
  %s3 = inlined_call_operand.vmem [shape: f32[64,16], index: 3, kind: input, shape index: {}]
  %s4 = inlined_call_operand.vmem [shape: f32[1,16], index: 4, kind: input, shape index: {}]
  %s5 = inlined_call_operand.vmem [shape: f32[16,8], index: 5, kind: input, shape index: {}]
  %s6 = inlined_call_operand.vmem [shape: f32[1,8], index: 6, kind: input, shape index: {}]
  %s7 = inlined_call_operand.vmem [shape: f32[20,8], index: 7, kind: output, shape index: {}]
  %s8 = sld [smem:[#allocation0]]
  $region109: #{tpu_custom_call.1} parent=0
    _
  %s10 = ssub.s32 1, %s8
  %s11 = scalar_select 0, %s10, %s8
  $region1: #{tpu_custom_call.1} parent=0
    #allocation2 [shape = 'u8[16384]{0}', space=vmem, size = 0x4000, scoped, tag = 'output window, operand 0']
    loop: start=0, step=1, limit=4
    $region2: #{tpu_custom_call.1} parent=1 // loop_pre_header
      _
    $region3: #{tpu_custom_call.1} parent=1 // loop_header
      %s13 = sphi 0, %s17
      %p14 = scmp.ge.s32.totalorder %s13, 4
      %s23 = sphi 0, %s25
      %s26 = sphi 0, %s23
      %s27 = sphi 0, %s26
      %s43 = sphi 0, %s27
      %s47 = sphi 0, %s47
      %s49 = sphi 0, %s47
      %s50 = sphi 0, %s49
      %s64 = sphi 0, %s50
      %s68 = sphi 0, %s68
      %s70 = sphi 0, %s68
      %s71 = sphi 0, %s70
      %s85 = sphi 0, %s71
      %s89 = sphi 0, %s89
      %s91 = sphi 0, %s89
      %s92 = sphi 0, %s91
      %s106 = sphi 0, %s92
      %s110 = sphi 0, %s110
      %s112 = sphi 0, %s110
      %s113 = sphi 0, %s112
      %s127 = sphi 0, %s113
      %s131 = sphi 0, %s131
      %s133 = sphi 0, %s131
      %s134 = sphi 0, %s133
      %s148 = sphi 0, %s134
      %s152 = sphi 0, %s152
      %s154 = sphi 0, %s152
      %s155 = sphi 0, %s154
      %s169 = sphi 0, %s155
      %s175 = sphi 0, %s177
      %s178 = sphi 0, %s175
      %s179 = sphi 0, %s178
      %s195 = sphi 0, %s179
    $region4: #{tpu_custom_call.1} parent=1 // loop_header_branch
      %16 = sbr.rel (%p14) target = $region8
    $region5: #{tpu_custom_call.1} parent=1 // loop_body
      %s18 = ssub.s32 %s13, 1
      %s19 = ssub.s32 %s13, 2
      %s20 = sadd.s32 %s13, 1
      %s21 = ssub.s32 %s13, %s20
      %p22 = scmp.eq.s32.totalorder %s21, 0
      %s24 = sadd.s32 %s23, 1
      %s25 = scalar_select %p22, %s23, %s24
      %p28 = pneg %p22
      %p29 = scmp.eq.s32.totalorder %s13, 1
      %p30 = por %p28, %p29
      %p31 = scmp.ne.s32.totalorder %s23, %s26
      %p32 = scmp.eq.s32.totalorder %s13, 0
      %p33 = por %p31, %p32
      %p34 = scmp.ne.s32.totalorder %s23, %s26
      %p35 = scmp.eq.s32.totalorder %s18, 1
      %p36 = por %p34, %p35
      %p37 = scmp.ne.s32.totalorder %s26, %s27
      %p38 = scmp.eq.s32.totalorder %s18, 0
      %p39 = por %p37, %p38
      %p40 = scmp.ne.s32.totalorder %s26, %s27
      %p41 = scmp.eq.s32.totalorder %s19, 1
      %p42 = por %p40, %p41
      %p44 = scmp.ne.s32.totalorder %s27, %s43
      %p45 = scmp.eq.s32.totalorder %s19, 0
      %p46 = por %p44, %p45
      %s48 = sadd.s32 %s47, 1
      %p51 = scmp.eq.s32.totalorder %s13, 1
      %p52 = scmp.ne.s32.totalorder %s47, %s49
      %p53 = scmp.eq.s32.totalorder %s13, 0
      %p54 = por %p52, %p53
      %p55 = scmp.ne.s32.totalorder %s47, %s49
      %p56 = scmp.eq.s32.totalorder %s18, 1
      %p57 = por %p55, %p56
      %p58 = scmp.ne.s32.totalorder %s49, %s50
      %p59 = scmp.eq.s32.totalorder %s18, 0
      %p60 = por %p58, %p59
      %p61 = scmp.ne.s32.totalorder %s49, %s50
      %p62 = scmp.eq.s32.totalorder %s19, 1
      %p63 = por %p61, %p62
      %p65 = scmp.ne.s32.totalorder %s50, %s64
      %p66 = scmp.eq.s32.totalorder %s19, 0
      %p67 = por %p65, %p66
      %s69 = sadd.s32 %s68, 1
      %p72 = scmp.eq.s32.totalorder %s13, 1
      %p73 = scmp.ne.s32.totalorder %s68, %s70
      %p74 = scmp.eq.s32.totalorder %s13, 0
      %p75 = por %p73, %p74
      %p76 = scmp.ne.s32.totalorder %s68, %s70
      %p77 = scmp.eq.s32.totalorder %s18, 1
      %p78 = por %p76, %p77
      %p79 = scmp.ne.s32.totalorder %s70, %s71
      %p80 = scmp.eq.s32.totalorder %s18, 0
      %p81 = por %p79, %p80
      %p82 = scmp.ne.s32.totalorder %s70, %s71
      %p83 = scmp.eq.s32.totalorder %s19, 1
      %p84 = por %p82, %p83
      %p86 = scmp.ne.s32.totalorder %s71, %s85
      %p87 = scmp.eq.s32.totalorder %s19, 0
      %p88 = por %p86, %p87
      %s90 = sadd.s32 %s89, 1
      %p93 = scmp.eq.s32.totalorder %s13, 1
      %p94 = scmp.ne.s32.totalorder %s89, %s91
      %p95 = scmp.eq.s32.totalorder %s13, 0
      %p96 = por %p94, %p95
      %p97 = scmp.ne.s32.totalorder %s89, %s91
      %p98 = scmp.eq.s32.totalorder %s18, 1
      %p99 = por %p97, %p98
      %p100 = scmp.ne.s32.totalorder %s91, %s92
      %p101 = scmp.eq.s32.totalorder %s18, 0
      %p102 = por %p100, %p101
      %p103 = scmp.ne.s32.totalorder %s91, %s92
      %p104 = scmp.eq.s32.totalorder %s19, 1
      %p105 = por %p103, %p104
      %p107 = scmp.ne.s32.totalorder %s92, %s106
      %p108 = scmp.eq.s32.totalorder %s19, 0
      %p109 = por %p107, %p108
      %s111 = sadd.s32 %s110, 1
      %p114 = scmp.eq.s32.totalorder %s13, 1
      %p115 = scmp.ne.s32.totalorder %s110, %s112
      %p116 = scmp.eq.s32.totalorder %s13, 0
      %p117 = por %p115, %p116
      %p118 = scmp.ne.s32.totalorder %s110, %s112
      %p119 = scmp.eq.s32.totalorder %s18, 1
      %p120 = por %p118, %p119
      %p121 = scmp.ne.s32.totalorder %s112, %s113
      %p122 = scmp.eq.s32.totalorder %s18, 0
      %p123 = por %p121, %p122
      %p124 = scmp.ne.s32.totalorder %s112, %s113
      %p125 = scmp.eq.s32.totalorder %s19, 1
      %p126 = por %p124, %p125
      %p128 = scmp.ne.s32.totalorder %s113, %s127
      %p129 = scmp.eq.s32.totalorder %s19, 0
      %p130 = por %p128, %p129
      %s132 = sadd.s32 %s131, 1
      %p135 = scmp.eq.s32.totalorder %s13, 1
      %p136 = scmp.ne.s32.totalorder %s131, %s133
      %p137 = scmp.eq.s32.totalorder %s13, 0
      %p138 = por %p136, %p137
      %p139 = scmp.ne.s32.totalorder %s131, %s133
      %p140 = scmp.eq.s32.totalorder %s18, 1
      %p141 = por %p139, %p140
      %p142 = scmp.ne.s32.totalorder %s133, %s134
      %p143 = scmp.eq.s32.totalorder %s18, 0
      %p144 = por %p142, %p143
      %p145 = scmp.ne.s32.totalorder %s133, %s134
      %p146 = scmp.eq.s32.totalorder %s19, 1
      %p147 = por %p145, %p146
      %p149 = scmp.ne.s32.totalorder %s134, %s148
      %p150 = scmp.eq.s32.totalorder %s19, 0
      %p151 = por %p149, %p150
      %s153 = sadd.s32 %s152, 1
      %p156 = scmp.eq.s32.totalorder %s13, 1
      %p157 = scmp.ne.s32.totalorder %s152, %s154
      %p158 = scmp.eq.s32.totalorder %s13, 0
      %p159 = por %p157, %p158
      %p160 = scmp.ne.s32.totalorder %s152, %s154
      %p161 = scmp.eq.s32.totalorder %s18, 1
      %p162 = por %p160, %p161
      %p163 = scmp.ne.s32.totalorder %s154, %s155
      %p164 = scmp.eq.s32.totalorder %s18, 0
      %p165 = por %p163, %p164
      %p166 = scmp.ne.s32.totalorder %s154, %s155
      %p167 = scmp.eq.s32.totalorder %s19, 1
      %p168 = por %p166, %p167
      %p170 = scmp.ne.s32.totalorder %s155, %s169
      %p171 = scmp.eq.s32.totalorder %s19, 0
      %p172 = por %p170, %p171
      %s173 = ssub.s32 %s13, %s20
      %p174 = scmp.eq.s32.totalorder %s173, 0
      %s176 = sadd.s32 %s175, 1
      %s177 = scalar_select %p174, %s175, %s176
      %p180 = pneg %p174
      %p181 = scmp.eq.s32.totalorder %s13, 1
      %p182 = por %p180, %p181
      %p183 = scmp.ne.s32.totalorder %s175, %s178
      %p184 = scmp.eq.s32.totalorder %s13, 0
      %p185 = por %p183, %p184
      %p186 = scmp.ne.s32.totalorder %s175, %s178
      %p187 = scmp.eq.s32.totalorder %s18, 1
      %p188 = por %p186, %p187
      %p189 = scmp.ne.s32.totalorder %s178, %s179
      %p190 = scmp.eq.s32.totalorder %s18, 0
      %p191 = por %p189, %p190
      %p192 = scmp.ne.s32.totalorder %s178, %s179
      %p193 = scmp.eq.s32.totalorder %s19, 1
      %p194 = por %p192, %p193
      %p196 = scmp.ne.s32.totalorder %s179, %s195
      %p197 = scmp.eq.s32.totalorder %s19, 0
      %p198 = por %p196, %p197
      %p199 = scmp.le.s32.totalorder 1, %s13
      %p200 = scmp.lt.s32.totalorder %s13, 3
      %p201 = pnand %p199, %p200
      %p202 = pneg %p201
      // Predicated region
      $region9: #{tpu_custom_call.1} parent=5 // pred_check
        _
      $region10: #{tpu_custom_call.1} parent=5 // pred_check_branch
        %204 = sbr.rel (%p201) target = $region12
      $region11: #{tpu_custom_call.1} parent=5 // pred_region
        %s205 = ssub.s32 %s13, 1
        // Predicated region
        $region13: #{tpu_custom_call.1} parent=11 // pred_check
          %p206 = pneg %p60
        $region14: #{tpu_custom_call.1} parent=11 // pred_check_branch
          %208 = sbr.rel (%p206) target = $region16
        $region15: #{tpu_custom_call.1} parent=11 // pred_region
          _
        $region16: #{tpu_custom_call.1} parent=11 // pred_fallthru
          _
        // Predicated region
        $region17: #{tpu_custom_call.1} parent=11 // pred_check
          %p209 = pneg %p81
        $region18: #{tpu_custom_call.1} parent=11 // pred_check_branch
          %211 = sbr.rel (%p209) target = $region20
        $region19: #{tpu_custom_call.1} parent=11 // pred_region
          _
        $region20: #{tpu_custom_call.1} parent=11 // pred_fallthru
          _
        // Predicated region
        $region21: #{tpu_custom_call.1} parent=11 // pred_check
          %p212 = pneg %p102
        $region22: #{tpu_custom_call.1} parent=11 // pred_check_branch
          %214 = sbr.rel (%p212) target = $region24
        $region23: #{tpu_custom_call.1} parent=11 // pred_region
          _
        $region24: #{tpu_custom_call.1} parent=11 // pred_fallthru
          _
        // Predicated region
        $region25: #{tpu_custom_call.1} parent=11 // pred_check
          %p215 = pneg %p123
        $region26: #{tpu_custom_call.1} parent=11 // pred_check_branch
          %217 = sbr.rel (%p215) target = $region28
        $region27: #{tpu_custom_call.1} parent=11 // pred_region
          _
        $region28: #{tpu_custom_call.1} parent=11 // pred_fallthru
          _
        // Predicated region
        $region29: #{tpu_custom_call.1} parent=11 // pred_check
          %p218 = pneg %p144
        $region30: #{tpu_custom_call.1} parent=11 // pred_check_branch
          %220 = sbr.rel (%p218) target = $region32
        $region31: #{tpu_custom_call.1} parent=11 // pred_region
          _
        $region32: #{tpu_custom_call.1} parent=11 // pred_fallthru
          _
        // Predicated region
        $region33: #{tpu_custom_call.1} parent=11 // pred_check
          %p221 = pneg %p165
        $region34: #{tpu_custom_call.1} parent=11 // pred_check_branch
          %223 = sbr.rel (%p221) target = $region36
        $region35: #{tpu_custom_call.1} parent=11 // pred_region
          _
        $region36: #{tpu_custom_call.1} parent=11 // pred_fallthru
          _
      $region12: #{tpu_custom_call.1} parent=5 // pred_fallthru
        _
      %p224 = scmp.lt.s32.totalorder %s13, 2
      // Predicated region
      $region37: #{tpu_custom_call.1} parent=5 // pred_check
        %p225 = pneg %p224
      $region38: #{tpu_custom_call.1} parent=5 // pred_check_branch
        %227 = sbr.rel (%p225) target = $region40
      $region39: #{tpu_custom_call.1} parent=5 // pred_region
        // Predicated region
        $region41: #{tpu_custom_call.1} parent=39 // pred_check
          %p228 = pneg %p33
        $region42: #{tpu_custom_call.1} parent=39 // pred_check_branch
          %230 = sbr.rel (%p228) target = $region44
        $region43: #{tpu_custom_call.1} parent=39 // pred_region
          %s231 = smul.u32 2, %s13
          %s232 = ssub.s32 3, %s231
          %p233 = scmp.lt.s32.totalorder %s232, 2
          %s234 = scalar_select %p233, %s232, 2
          %s235 = smul.u32 128, %s234
          %p236 = scmp.lt.s32.totalorder %s231, 2
          %s237 = scalar_select %p236, %s231, 2
          %s238 = smul.addr %s237, 8
          %s239 = scalar_lea.vmem %s0, %s238
          %s240 = smul.u32 2, %s13
          %s241 = ssub.s32 3, %s240
          %p242 = scmp.lt.s32.totalorder %s241, 2
          %s243 = scalar_select %p242, %s241, 2
          %s244 = smul.u32 128, %s243
        $region44: #{tpu_custom_call.1} parent=39 // pred_fallthru
          _
      $region40: #{tpu_custom_call.1} parent=5 // pred_fallthru
        _
      %p245 = scmp.le.s32.totalorder 1, %s13
      %p246 = scmp.lt.s32.totalorder %s13, 3
      %p247 = pnand %p245, %p246
      %p248 = pneg %p247
      // Predicated region
      $region45: #{tpu_custom_call.1} parent=5 // pred_check
        _
      $region46: #{tpu_custom_call.1} parent=5 // pred_check_branch
        %250 = sbr.rel (%p247) target = $region48
      $region47: #{tpu_custom_call.1} parent=5 // pred_region
        %s251 = ssub.s32 %s13, 1
        %s252 = smul.u32 2, %s18
        %s253 = ssub.s32 3, %s252
        %p254 = scmp.lt.s32.totalorder %s253, 2
        %s255 = scalar_select %p254, %s253, 2
        %s256 = smul.u32 128, %s255
        %p257 = scmp.lt.s32.totalorder %s252, 2
        %s258 = scalar_select %p257, %s252, 2
        %s259 = smul.addr %s258, 8
        %s260 = scalar_lea.vmem %s0, %s259
        %p261 = pneg %p39
        %p262 = pneg %p36
        %p263 = pneg %p60
        %p264 = pneg %p57
        %p265 = pneg %p81
        %p266 = pneg %p78
        %p267 = pneg %p102
        %p268 = pneg %p99
        %p269 = pneg %p123
        %p270 = pneg %p120
        %p271 = pneg %p144
        %p272 = pneg %p141
        %p273 = pneg %p165
        %p274 = pneg %p162
        %p275 = pneg %p191
        %p276 = pneg %p188
        %s277 = sand.u32 %s178, 1
        %s278 = sand.u32 %s178, 1
        %s279 = smul.addr %s278, 16
        %s280 = scalar_lea.vmem [#allocation2], %s279
        %s281 = smul.u32 2, %s18
        %s282 = ssub.s32 3, %s281
        %p283 = scmp.lt.s32.totalorder %s282, 2
        %s284 = scalar_select %p283, %s282, 2
        %s285 = smul.u32 128, %s284
        %p286 = scmp.lt.s32.totalorder %s281, 2
        %s287 = scalar_select %p286, %s281, 2
        %s288 = smul.addr %s287, 8
        %s289 = scalar_lea.vmem %s0, %s288
        %s290 = smul.u32 2, %s18
        %s291 = ssub.s32 3, %s290
        %p292 = scmp.lt.s32.totalorder %s291, 2
        %s293 = scalar_select %p292, %s291, 2
        %s294 = smul.u32 128, %s293
        %s295 = smul.u32 2, %s18
        %s296 = ssub.s32 3, %s295
        %p297 = scmp.lt.s32.totalorder %s296, 2
        %s298 = scalar_select %p297, %s296, 2
        %s299 = smul.u32 128, %s298
        %v300 = vld [vmem:[%s289] sm:$0xff]
        %v301 = vld [vmem:[%s289 + $0x8] sm:$0xff]
        %v302 = vld [vmem:[%s1] sm:$0xff]
        %v303 = vld [vmem:[%s1 + $0x8] sm:$0xff]
        %v304 = vld [vmem:[%s1 + $0x10] sm:$0xff]
        %v305 = vld [vmem:[%s1 + $0x18] sm:$0xff]
        %v306 = vld [vmem:[%s2] sm:$0x1]
        %v308 = vlaneseq
        %v309 = vshrl.u32 %v308, 7
        %v310 = vsub.s32 0, %v309
        %v311 = vrot.slane %v306, %v310
        %vm313 = vcmask 261120
        %v315 = vsel %vm313, %v300, 0
        %v318 = vsel %vm313, %v301, 0
        %320 = vmatprep.subr.mxu0 0.0
        %321 = vmatpush1.msra.mxu0 %v302
        %322 = vmatprep.subr.mxu0 0.0
        %323 = vmatpush1.msra.mxu0 %v303
        %324 = vmatprep.subr.mxu0 0.0
        %325 = vmatpush1.msra.mxu0 %v304
        %326 = vmatprep.subr.mxu0 0.0
        %327 = vmatpush1.msra.mxu0 %v305
        %328 = vmatprep.subr.mxu0 0.0
        %329 = vmatpush1.msra.mxu0 0.0
        %330 = vmatprep.subr.mxu0 0.0
        %331 = vmatpush1.msra.mxu0 0.0
        %332 = vmatprep.subr.mxu0 0.0
        %333 = vmatpush1.msra.mxu0 0.0
        %334 = vmatprep.subr.mxu0 0.0
        %335 = vmatpush1.msra.mxu0 0.0
        %336 = vmatprep.subr.mxu0 0.0
        %337 = vmatpush1.msra.mxu0 0.0
        %338 = vmatprep.subr.mxu0 0.0
        %339 = vmatpush1.msra.mxu0 0.0
        %340 = vmatprep.subr.mxu0 0.0
        %341 = vmatpush1.msra.mxu0 0.0
        %342 = vmatprep.subr.mxu0 0.0
        %343 = vmatpush1.msra.mxu0 0.0
        %344 = vmatprep.subr.mxu0 0.0
        %345 = vmatpush1.msra.mxu0 0.0
        %346 = vmatprep.subr.mxu0 0.0
        %347 = vmatpush1.msra.mxu0 0.0
        %348 = vmatprep.subr.mxu0 0.0
        %349 = vmatpush1.msra.mxu0 0.0
        %350 = vmatprep.subr.mxu0 0.0
        %351 = vmatpush1.msra.mxu0 0.0
        %352 = vmatprep.subr.mxu0 0.0
        %353 = vmatpush1.msra.mxu0 0.0
        %354 = vmatprep.subr.mxu0 0.0
        %355 = vmatpush1.msra.mxu0 0.0
        %356 = vmatprep.subr.mxu0 0.0
        %357 = vmatpush1.msra.mxu0 0.0
        %358 = vmatprep.subr.mxu0 0.0
        %359 = vmatpush1.msra.mxu0 0.0
        %360 = vmatprep.subr.mxu0 0.0
        %361 = vmatpush1.msra.mxu0 0.0
        %362 = vmatprep.subr.mxu0 0.0
        %363 = vmatpush1.msra.mxu0 0.0
        %364 = vmatprep.subr.mxu0 0.0
        %365 = vmatpush1.msra.mxu0 0.0
        %366 = vmatprep.subr.mxu0 0.0
        %367 = vmatpush1.msra.mxu0 0.0
        %368 = vmatprep.subr.mxu0 0.0
        %369 = vmatpush1.msra.mxu0 0.0
        %370 = vmatprep.subr.mxu0 0.0
        %371 = vmatpush1.msra.mxu0 0.0
        %372 = vmatprep.subr.mxu0 0.0
        %373 = vmatpush1.msra.mxu0 0.0
        %374 = vmatprep.subr.mxu0 0.0
        %375 = vmatpush1.msra.mxu0 0.0
        %376 = vmatprep.subr.mxu0 0.0
        %377 = vmatpush1.msra.mxu0 0.0
        %378 = vmatprep.subr.mxu0 0.0
        %379 = vmatpush1.msra.mxu0 0.0
        %380 = vmatprep.subr.mxu0 0.0
        %381 = vmatpush1.msra.mxu0 0.0
        %382 = vmatprep.subr.mxu0 0.0
        %383 = vmatpush1.msra.mxu0 0.0
        %384 = vmatprep.mubr.f32.mxu0 0.0
        %385 = vmatmul.mubr.f32.gmra.mrb[0].mxu0 %v315
        %v386 = vpop.f32.mrb[0].mxu0
        %v387 = vadd.f32 %v311, %v386
        %v388 = vpop.f32.mrb[0].mxu0
        %389 = vmatprep.mubr.f32.mxu0 0.0
        %390 = vmatmul.mubr.f32.gmra.mrb[0].mxu0 %v318
        %v391 = vpop.f32.mrb[0].mxu0
        %v392 = vadd.f32 %v311, %v391
        %v393 = vpop.f32.mrb[0].mxu0
        %394 = vdwg.mxu0
        %v395 = vmax.f32 %v387, 0.0
        %v396 = vmax.f32 %v392, 0.0
        %v397 = vld [vmem:[%s3] sm:$0xff]
        %v398 = vld [vmem:[%s3 + $0x8] sm:$0xff]
        %v399 = vld [vmem:[%s3 + $0x10] sm:$0xff]
        %v400 = vld [vmem:[%s3 + $0x18] sm:$0xff]
        %v401 = vld [vmem:[%s3 + $0x20] sm:$0xff]
        %v402 = vld [vmem:[%s3 + $0x28] sm:$0xff]
        %v403 = vld [vmem:[%s3 + $0x30] sm:$0xff]
        %v404 = vld [vmem:[%s3 + $0x38] sm:$0xff]
        %v405 = vld [vmem:[%s4] sm:$0x1]
        %v407 = vlaneseq
        %v408 = vshrl.u32 %v407, 7
        %v409 = vsub.s32 0, %v408
        %v410 = vrot.slane %v405, %v409
        %vm412 = vcmask 523264
        %v414 = vsel %vm412, %v395, 0
        %v417 = vsel %vm412, %v396, 0
        %419 = vmatprep.subr.mxu0 0.0
        %420 = vmatpush1.msra.mxu0 %v397
        %421 = vmatprep.subr.mxu0 0.0
        %422 = vmatpush1.msra.mxu0 %v398
        %423 = vmatprep.subr.mxu0 0.0
        %424 = vmatpush1.msra.mxu0 %v399
        %425 = vmatprep.subr.mxu0 0.0
        %426 = vmatpush1.msra.mxu0 %v400
        %427 = vmatprep.subr.mxu0 0.0
        %428 = vmatpush1.msra.mxu0 %v401
        %429 = vmatprep.subr.mxu0 0.0
        %430 = vmatpush1.msra.mxu0 %v402
        %431 = vmatprep.subr.mxu0 0.0
        %432 = vmatpush1.msra.mxu0 %v403
        %433 = vmatprep.subr.mxu0 0.0
        %434 = vmatpush1.msra.mxu0 %v404
        %435 = vmatprep.subr.mxu0 0.0
        %436 = vmatpush1.msra.mxu0 0.0
        %437 = vmatprep.subr.mxu0 0.0
        %438 = vmatpush1.msra.mxu0 0.0
        %439 = vmatprep.subr.mxu0 0.0
        %440 = vmatpush1.msra.mxu0 0.0
        %441 = vmatprep.subr.mxu0 0.0
        %442 = vmatpush1.msra.mxu0 0.0
        %443 = vmatprep.subr.mxu0 0.0
        %444 = vmatpush1.msra.mxu0 0.0
        %445 = vmatprep.subr.mxu0 0.0
        %446 = vmatpush1.msra.mxu0 0.0
        %447 = vmatprep.subr.mxu0 0.0
        %448 = vmatpush1.msra.mxu0 0.0
        %449 = vmatprep.subr.mxu0 0.0
        %450 = vmatpush1.msra.mxu0 0.0
        %451 = vmatprep.subr.mxu0 0.0
        %452 = vmatpush1.msra.mxu0 0.0
        %453 = vmatprep.subr.mxu0 0.0
        %454 = vmatpush1.msra.mxu0 0.0
        %455 = vmatprep.subr.mxu0 0.0
        %456 = vmatpush1.msra.mxu0 0.0
        %457 = vmatprep.subr.mxu0 0.0
        %458 = vmatpush1.msra.mxu0 0.0
        %459 = vmatprep.subr.mxu0 0.0
        %460 = vmatpush1.msra.mxu0 0.0
        %461 = vmatprep.subr.mxu0 0.0
        %462 = vmatpush1.msra.mxu0 0.0
        %463 = vmatprep.subr.mxu0 0.0
        %464 = vmatpush1.msra.mxu0 0.0
        %465 = vmatprep.subr.mxu0 0.0
        %466 = vmatpush1.msra.mxu0 0.0
        %467 = vmatprep.subr.mxu0 0.0
        %468 = vmatpush1.msra.mxu0 0.0
        %469 = vmatprep.subr.mxu0 0.0
        %470 = vmatpush1.msra.mxu0 0.0
        %471 = vmatprep.subr.mxu0 0.0
        %472 = vmatpush1.msra.mxu0 0.0
        %473 = vmatprep.subr.mxu0 0.0
        %474 = vmatpush1.msra.mxu0 0.0
        %475 = vmatprep.subr.mxu0 0.0
        %476 = vmatpush1.msra.mxu0 0.0
        %477 = vmatprep.subr.mxu0 0.0
        %478 = vmatpush1.msra.mxu0 0.0
        %479 = vmatprep.subr.mxu0 0.0
        %480 = vmatpush1.msra.mxu0 0.0
        %481 = vmatprep.subr.mxu0 0.0
        %482 = vmatpush1.msra.mxu0 0.0
        %483 = vmatprep.mubr.f32.mxu0 0.0
        %484 = vmatmul.mubr.f32.gmra.mrb[0].mxu0 %v414
        %v485 = vpop.f32.mrb[0].mxu0
        %v486 = vadd.f32 %v410, %v485
        %v487 = vpop.f32.mrb[0].mxu0
        %488 = vmatprep.mubr.f32.mxu0 0.0
        %489 = vmatmul.mubr.f32.gmra.mrb[0].mxu0 %v417
        %v490 = vpop.f32.mrb[0].mxu0
        %v491 = vadd.f32 %v410, %v490
        %v492 = vpop.f32.mrb[0].mxu0
        %493 = vdwg.mxu0
        %v494 = vmax.f32 %v486, 0.0
        %v495 = vmax.f32 %v491, 0.0
        %v496 = vld [vmem:[%s5] sm:$0xff]
        %v497 = vld [vmem:[%s5 + $0x8] sm:$0xff]
        %v498 = vld [vmem:[%s6] sm:$0x1]
        %v500 = vlaneseq
        %v501 = vshrl.u32 %v500, 7
        %v502 = vsub.s32 0, %v501
        %v503 = vrot.slane %v498, %v502
        %vm505 = vcmask 130048
        %v507 = vsel %vm505, %v494, 0
        %v510 = vsel %vm505, %v495, 0
        %512 = vmatprep.subr.mxu0 0.0
        %513 = vmatpush1.msra.mxu0 %v496
        %514 = vmatprep.subr.mxu0 0.0
        %515 = vmatpush1.msra.mxu0 %v497
        %516 = vmatprep.subr.mxu0 0.0
        %517 = vmatpush1.msra.mxu0 0.0
        %518 = vmatprep.subr.mxu0 0.0
        %519 = vmatpush1.msra.mxu0 0.0
        %520 = vmatprep.subr.mxu0 0.0
        %521 = vmatpush1.msra.mxu0 0.0
        %522 = vmatprep.subr.mxu0 0.0
        %523 = vmatpush1.msra.mxu0 0.0
        %524 = vmatprep.subr.mxu0 0.0
        %525 = vmatpush1.msra.mxu0 0.0
        %526 = vmatprep.subr.mxu0 0.0
        %527 = vmatpush1.msra.mxu0 0.0
        %528 = vmatprep.subr.mxu0 0.0
        %529 = vmatpush1.msra.mxu0 0.0
        %530 = vmatprep.subr.mxu0 0.0
        %531 = vmatpush1.msra.mxu0 0.0
        %532 = vmatprep.subr.mxu0 0.0
        %533 = vmatpush1.msra.mxu0 0.0
        %534 = vmatprep.subr.mxu0 0.0
        %535 = vmatpush1.msra.mxu0 0.0
        %536 = vmatprep.subr.mxu0 0.0
        %537 = vmatpush1.msra.mxu0 0.0
        %538 = vmatprep.subr.mxu0 0.0
        %539 = vmatpush1.msra.mxu0 0.0
        %540 = vmatprep.subr.mxu0 0.0
        %541 = vmatpush1.msra.mxu0 0.0
        %542 = vmatprep.subr.mxu0 0.0
        %543 = vmatpush1.msra.mxu0 0.0
        %544 = vmatprep.subr.mxu0 0.0
        %545 = vmatpush1.msra.mxu0 0.0
        %546 = vmatprep.subr.mxu0 0.0
        %547 = vmatpush1.msra.mxu0 0.0
        %548 = vmatprep.subr.mxu0 0.0
        %549 = vmatpush1.msra.mxu0 0.0
        %550 = vmatprep.subr.mxu0 0.0
        %551 = vmatpush1.msra.mxu0 0.0
        %552 = vmatprep.subr.mxu0 0.0
        %553 = vmatpush1.msra.mxu0 0.0
        %554 = vmatprep.subr.mxu0 0.0
        %555 = vmatpush1.msra.mxu0 0.0
        %556 = vmatprep.subr.mxu0 0.0
        %557 = vmatpush1.msra.mxu0 0.0
        %558 = vmatprep.subr.mxu0 0.0
        %559 = vmatpush1.msra.mxu0 0.0
        %560 = vmatprep.subr.mxu0 0.0
        %561 = vmatpush1.msra.mxu0 0.0
        %562 = vmatprep.subr.mxu0 0.0
        %563 = vmatpush1.msra.mxu0 0.0
        %564 = vmatprep.subr.mxu0 0.0
        %565 = vmatpush1.msra.mxu0 0.0
        %566 = vmatprep.subr.mxu0 0.0
        %567 = vmatpush1.msra.mxu0 0.0
        %568 = vmatprep.subr.mxu0 0.0
        %569 = vmatpush1.msra.mxu0 0.0
        %570 = vmatprep.subr.mxu0 0.0
        %571 = vmatpush1.msra.mxu0 0.0
        %572 = vmatprep.subr.mxu0 0.0
        %573 = vmatpush1.msra.mxu0 0.0
        %574 = vmatprep.subr.mxu0 0.0
        %575 = vmatpush1.msra.mxu0 0.0
        %576 = vmatprep.mubr.f32.mxu0 0.0
        %577 = vmatmul.mubr.f32.gmra.mrb[0].mxu0 %v507
        %v578 = vpop.f32.mrb[0].mxu0
        %v579 = vadd.f32 %v503, %v578
        %v580 = vpop.f32.mrb[0].mxu0
        %581 = vmatprep.mubr.f32.mxu0 0.0
        %582 = vmatmul.mubr.f32.gmra.mrb[0].mxu0 %v510
        %v583 = vpop.f32.mrb[0].mxu0
        %v584 = vadd.f32 %v503, %v583
        %v585 = vpop.f32.mrb[0].mxu0
        %586 = vdwg.mxu0
        %vm587 = vcmask 64512
        %588 = vst.msk [vmem:[%s280] sm:$0xff] %vm587, %v579
        %589 = vst.msk [vmem:[%s280 + $0x8] sm:$0xff] %vm587, %v584
        %s590 = sand.u32 %s178, 1
        %s591 = sand.u32 %s178, 1
        %s592 = smul.addr %s591, 16
        %s593 = scalar_lea.vmem [#allocation2], %s592
        // Predicated region
        $region49: #{tpu_custom_call.1} parent=47 // pred_check
          %p594 = pneg %p188
        $region50: #{tpu_custom_call.1} parent=47 // pred_check_branch
          %596 = sbr.rel (%p594) target = $region52
        $region51: #{tpu_custom_call.1} parent=47 // pred_region
          %s597 = smul.u32 2, %s18
          %s598 = ssub.s32 3, %s597
          %p599 = scmp.lt.s32.totalorder %s598, 2
          %s600 = scalar_select %p599, %s598, 2
          %s601 = smul.u32 128, %s600
          %p602 = scmp.ne.s32.totalorder 0, %s601
          %s603 = smul.addr %s597, 8
          %s604 = scalar_lea.vmem %s7, %s603
          // Predicated region
          $region53: #{tpu_custom_call.1} parent=51 // pred_check
            %p605 = pneg %p602
          $region54: #{tpu_custom_call.1} parent=51 // pred_check_branch
            %607 = sbr.rel (%p605) target = $region56
          $region55: #{tpu_custom_call.1} parent=51 // pred_region
            // Predicated region
            $region57: #{tpu_custom_call.1} parent=55 // pred_check
              _
            $region58: #{tpu_custom_call.1} parent=55 // pred_check_branch
              %609 = sbr.rel (0) target = $region60
            $region59: #{tpu_custom_call.1} parent=55 // pred_region
              // Predicated region
              $region79: #{tpu_custom_call.1} parent=59 // pred_check
                _
              $region80: #{tpu_custom_call.1} parent=59 // pred_check_branch
                %660 = sbr.rel (0) target = $region82
              $region81: #{tpu_custom_call.1} parent=59 // pred_region
                %s661 = sshrl.u32 %s600, 1
                // While loop
                $region83: #{tpu_custom_call.1} parent=81 // loop_pre_header
                  _
                $region84: #{tpu_custom_call.1} parent=81 // loop_header
                  %s663 = sphi 0, %s665
                  %p664 = scmp.ge.s32.totalorder %s663, %s661
                  %s668 = sphi 0, %s677
                  %s669 = sphi %s593, %s680
                  %s670 = sphi %s604, %s681
                $region85: #{tpu_custom_call.1} parent=81 // loop_header_branch
                  %667 = sbr.rel (%p664) target = $region89
                $region86: #{tpu_custom_call.1} parent=81 // loop_body
                  %v671 = vld [vmem:[%s669] sm:$0xff]
                  %672 = vst [vmem:[%s670] sm:$0xff] %v671
                  %v673 = vld [vmem:[%s669 + $0x8] sm:$0xff]
                  %674 = vst [vmem:[%s670 + $0x8] sm:$0xff] %v673
                  %s675 = sadd.s32 1, %s668
                  %p676 = scmp.ge.s32.totalorder %s675, %s661
                  %s677 = scalar_select %p676, 0, %s675
                  %s678 = smul.u32 %s677, 16
                  %s679 = smul.u32 %s677, 16
                  %s680 = scalar_lea.vmem %s593, %s678 [#allocation2]
                  %s681 = scalar_lea.vmem %s604, %s679
                $region87: #{tpu_custom_call.1} parent=81 // loop_footer
                  %s665 = sadd.s32 %s663, 1
                $region88: #{tpu_custom_call.1} parent=81 // loop_footer_branch
                  %662 = sbr.rel target = $region84
                $region89: #{tpu_custom_call.1} parent=81 // loop_exit
                  _
                %s682 = sshrl.u32 %s600, 1
                %s683 = sand.u32 %s600, 1
                %s684 = smul.u32 %s682, 2
                %s685 = smul.u32 8, %s684
                %s686 = scalar_lea.vmem %s593, %s685 [#allocation2]
                %s687 = smul.u32 8, %s684
                %s688 = scalar_lea.vmem %s604, %s687
                // While loop
                $region90: #{tpu_custom_call.1} parent=81 // loop_pre_header
                  _
                $region91: #{tpu_custom_call.1} parent=81 // loop_header
                  %s690 = sphi 0, %s692
                  %p691 = scmp.ge.s32.totalorder %s690, %s683
                  %s695 = sphi 0, %s702
                  %s696 = sphi %s686, %s705
                  %s697 = sphi %s688, %s706
                $region92: #{tpu_custom_call.1} parent=81 // loop_header_branch
                  %694 = sbr.rel (%p691) target = $region96
                $region93: #{tpu_custom_call.1} parent=81 // loop_body
                  %v698 = vld [vmem:[%s696] sm:$0xff]
                  %699 = vst [vmem:[%s697] sm:$0xff] %v698
                  %s700 = sadd.s32 1, %s695
                  %p701 = scmp.ge.s32.totalorder %s700, %s683
                  %s702 = scalar_select %p701, 0, %s700
                  %s703 = smul.u32 %s702, 8
                  %s704 = smul.u32 %s702, 8
                  %s705 = scalar_lea.vmem %s686, %s703 [#allocation2]
                  %s706 = scalar_lea.vmem %s688, %s704
                $region94: #{tpu_custom_call.1} parent=81 // loop_footer
                  %s692 = sadd.s32 %s690, 1
                $region95: #{tpu_custom_call.1} parent=81 // loop_footer_branch
                  %689 = sbr.rel target = $region91
                $region96: #{tpu_custom_call.1} parent=81 // loop_exit
                  _
              $region82: #{tpu_custom_call.1} parent=59 // pred_fallthru
                _
              // Predicated region
              $region97: #{tpu_custom_call.1} parent=59 // pred_check
                _
              $region98: #{tpu_custom_call.1} parent=59 // pred_check_branch
                %708 = sbr.rel target = $region100
              $region99: #{tpu_custom_call.1} parent=59 // pred_region
                _
              $region100: #{tpu_custom_call.1} parent=59 // pred_fallthru
                _
            $region60: #{tpu_custom_call.1} parent=55 // pred_fallthru
              _
            // Predicated region
            $region61: #{tpu_custom_call.1} parent=55 // pred_check
              _
            $region62: #{tpu_custom_call.1} parent=55 // pred_check_branch
              %611 = sbr.rel target = $region64
            $region63: #{tpu_custom_call.1} parent=55 // pred_region
              %s613 = sshrl.u32 %s600, 1
              // While loop
              $region65: #{tpu_custom_call.1} parent=63 // loop_pre_header
                _
              $region66: #{tpu_custom_call.1} parent=63 // loop_header
                %s615 = sphi 0, %s617
                %p616 = scmp.ge.s32.totalorder %s615, %s613
                %s620 = sphi 0, %s629
                %s621 = sphi %s593, %s632
                %s622 = sphi %s604, %s633
              $region67: #{tpu_custom_call.1} parent=63 // loop_header_branch
                %619 = sbr.rel (%p616) target = $region71
              $region68: #{tpu_custom_call.1} parent=63 // loop_body
                %v623 = vld [vmem:[%s621] sm:$0xff]
                %624 = vst [vmem:[%s622] sm:$0xff] %v623
                %v625 = vld [vmem:[%s621 + $0x8] sm:$0xff]
                %626 = vst [vmem:[%s622 + $0x8] sm:$0xff] %v625
                %s627 = sadd.s32 1, %s620
                %p628 = scmp.ge.s32.totalorder %s627, %s613
                %s629 = scalar_select %p628, 0, %s627
                %s630 = smul.u32 %s629, 16
                %s631 = smul.u32 %s629, 16
                %s632 = scalar_lea.vmem %s593, %s630 [#allocation2]
                %s633 = scalar_lea.vmem %s604, %s631
              $region69: #{tpu_custom_call.1} parent=63 // loop_footer
                %s617 = sadd.s32 %s615, 1
              $region70: #{tpu_custom_call.1} parent=63 // loop_footer_branch
                %614 = sbr.rel target = $region66
              $region71: #{tpu_custom_call.1} parent=63 // loop_exit
                _
              %s634 = sshrl.u32 %s600, 1
              %s635 = sand.u32 %s600, 1
              %s636 = smul.u32 %s634, 2
              %s637 = smul.u32 8, %s636
              %s638 = scalar_lea.vmem %s593, %s637 [#allocation2]
              %s639 = smul.u32 8, %s636
              %s640 = scalar_lea.vmem %s604, %s639
              // While loop
              $region72: #{tpu_custom_call.1} parent=63 // loop_pre_header
                _
              $region73: #{tpu_custom_call.1} parent=63 // loop_header
                %s642 = sphi 0, %s644
                %p643 = scmp.ge.s32.totalorder %s642, %s635
                %s647 = sphi 0, %s654
                %s648 = sphi %s638, %s657
                %s649 = sphi %s640, %s658
              $region74: #{tpu_custom_call.1} parent=63 // loop_header_branch
                %646 = sbr.rel (%p643) target = $region78
              $region75: #{tpu_custom_call.1} parent=63 // loop_body
                %v650 = vld [vmem:[%s648] sm:$0xff]
                %651 = vst [vmem:[%s649] sm:$0xff] %v650
                %s652 = sadd.s32 1, %s647
                %p653 = scmp.ge.s32.totalorder %s652, %s635
                %s654 = scalar_select %p653, 0, %s652
                %s655 = smul.u32 %s654, 8
                %s656 = smul.u32 %s654, 8
                %s657 = scalar_lea.vmem %s638, %s655 [#allocation2]
                %s658 = scalar_lea.vmem %s640, %s656
              $region76: #{tpu_custom_call.1} parent=63 // loop_footer
                %s644 = sadd.s32 %s642, 1
              $region77: #{tpu_custom_call.1} parent=63 // loop_footer_branch
                %641 = sbr.rel target = $region73
              $region78: #{tpu_custom_call.1} parent=63 // loop_exit
                _
            $region64: #{tpu_custom_call.1} parent=55 // pred_fallthru
              _
          $region56: #{tpu_custom_call.1} parent=51 // pred_fallthru
            _
          %709 = vnop
        $region52: #{tpu_custom_call.1} parent=47 // pred_fallthru
          _
      $region48: #{tpu_custom_call.1} parent=5 // pred_fallthru
        _
      %p710 = scmp.le.s32.totalorder 2, %s13
      // Predicated region
      $region101: #{tpu_custom_call.1} parent=5 // pred_check
        %p711 = pneg %p710
      $region102: #{tpu_custom_call.1} parent=5 // pred_check_branch
        %713 = sbr.rel (%p711) target = $region104
      $region103: #{tpu_custom_call.1} parent=5 // pred_region
        %s714 = ssub.s32 %s13, 2
        // Predicated region
        $region105: #{tpu_custom_call.1} parent=103 // pred_check
          %p715 = pneg %p194
        $region106: #{tpu_custom_call.1} parent=103 // pred_check_branch
          %717 = sbr.rel (%p715) target = $region108
        $region107: #{tpu_custom_call.1} parent=103 // pred_region
          %s718 = sand.u32 %s179, 1
          %s719 = sand.u32 %s179, 1
          %s720 = smul.addr %s719, 16
          %s721 = scalar_lea.vmem [#allocation2], %s720
        $region108: #{tpu_custom_call.1} parent=103 // pred_fallthru
          _
      $region104: #{tpu_custom_call.1} parent=5 // pred_fallthru
        _
    $region6: #{tpu_custom_call.1} parent=1 // loop_footer
      %s17 = sadd.s32 1, %s13
    $region7: #{tpu_custom_call.1} parent=1 // loop_footer_branch
      %12 = sbr.rel target = $region3
    $region8: #{tpu_custom_call.1} parent=1 // loop_exit
      _

</llo_original>
